<compile_context>
chip_gen: v6e
topology: v6e:2x2x1
jax: 0.10.0
libtpu: 0.0.40
codegen_flags: <defaults>
</compile_context>

<pallas_src>
import functools

import jax
import jax.numpy as jnp
from jax import lax
from jax.experimental import pallas as pl
from jax.experimental.pallas import tpu as pltpu


def _round_up(x: int, m: int) -> int:
    return ((x + m - 1) // m) * m


# ----------------------------------------------------------------------------
# Path A ("resident"): table copied once into VMEM scratch; K-blocked one-hot
# MXU gather writing dense (TB, D) output tiles.
# ----------------------------------------------------------------------------
def _label_embed_resident_kernel(labels_ref, table_hbm, out_ref,
                                 table_vmem, table_sem, *, block_k: int):
    # labels_ref:  (B_pad, 1) int32 — whole label vector, resident in VMEM
    # table_hbm:   (V_pad, D)       — codebook, raw HBM ref (pl.ANY)
    # out_ref:     (TB, D)          — output tile for this grid step
    # table_vmem:  (V_pad, D)       — single VMEM-resident copy of the table
    # table_sem:   (1,) DMA semaphore
    i = pl.program_id(0)
    tb, d = out_ref.shape
    v_pad = table_vmem.shape[0]

    # Load the codebook into VMEM exactly once.  The grid axis is "arbitrary"
    # (sequential on one core), so step 0 always runs first.
    @pl.when(i == 0)
    def _():
        cp = pltpu.make_async_copy(table_hbm, table_vmem, table_sem.at[0])
        cp.start()
        cp.wait()

    start = pl.multiple_of(i * tb, tb)
    labels = labels_ref[pl.ds(start, tb), :]                    # (TB, 1) int32

    # K-blocked one-hot gather on the MXU: never materialize the (TB, V_pad)
    # one-hot; each block_k-wide slice feeds the MXU directly.
    acc = jnp.zeros((tb, d), jnp.float32)
    for k0 in range(0, v_pad, block_k):                         # static unroll
        ids = k0 + lax.broadcasted_iota(jnp.int32, (tb, block_k), 1)
        one_hot = (ids == labels).astype(table_vmem.dtype)      # (TB, block_k)
        acc = acc + jnp.dot(
            one_hot, table_vmem[k0:k0 + block_k, :],
            preferred_element_type=jnp.float32,
            precision=jax.lax.Precision.HIGHEST)                # f32-exact rows
    out_ref[...] = acc.astype(out_ref.dtype)


# ----------------------------------------------------------------------------
# Path B ("gather"): B << V.  Labels scalar-prefetched to SMEM; each needed
# row is DMA'd straight from the HBM table into the output block (8 in-flight
# row copies).  HBM traffic is B*D instead of V*D and the copy is bit-exact.
# ----------------------------------------------------------------------------
_GATHER_DMA_SLOTS = 8


def _label_embed_gather_kernel(labels_ref, table_hbm, out_ref, sems):
    # labels_ref: (B,) int32 in SMEM (scalar prefetch)
    # table_hbm:  (V, D) codebook, raw HBM ref (pl.ANY)
    # out_ref:    (B, D) VMEM output (single full block)
    # sems:       (_GATHER_DMA_SLOTS,) DMA semaphores — ring of in-flight rows
    n = out_ref.shape[0]
    ns = _GATHER_DMA_SLOTS

    @pl.loop(0, n)
    def _(r):
        slot = r % ns
        # Before reusing a slot, retire the row copy that used it previously.
        @pl.when(r >= ns)
        def _():
            pltpu.make_async_copy(table_hbm.at[0], out_ref.at[r - ns],
                                  sems.at[slot]).wait()
        pltpu.make_async_copy(table_hbm.at[labels_ref[r]], out_ref.at[r],
                              sems.at[slot]).start()

    # Drain the last (up to ns) outstanding row copies.
    @pl.loop(max(0, n - ns), n)
    def _(r):
        pltpu.make_async_copy(table_hbm.at[0], out_ref.at[r],
                              sems.at[r % ns]).wait()


# ----------------------------------------------------------------------------
# Wrapper
# ----------------------------------------------------------------------------
def label_embed_pallas(labels: jax.Array, codebook: jax.Array, *,
                       block_b: int = 128, block_k: int = 256,
                       mode: str = "auto") -> jax.Array:
    """Gather `codebook[labels]` with a Pallas TPU kernel.

    labels:   (B,) integer labels in [0, num_classes]
    codebook: (num_classes + 1, embed_dim)
    mode:     "auto" | "resident" | "gather"
    returns:  (B, embed_dim) in codebook's dtype
    """
    B = labels.shape[0]
    V, D = codebook.shape
    dtype = codebook.dtype
    itemsize = jnp.dtype(dtype).itemsize
    labels_i32 = labels.astype(jnp.int32)

    if mode == "auto":
        # Row-DMA gather when the batch is much smaller than the vocab (the
        # resident path pays a full V*D table load to produce only B*D bytes)
        # or when the table is too large to keep resident in VMEM.
        mode = ("gather"
                if (B <= V // 4 or V * D * itemsize > (24 << 20))
                else "resident")

    if mode == "gather":
        # Clamp to valid rows: an out-of-range label would otherwise be an OOB
        # HBM DMA (see TODO at top of file).
        safe_labels = jnp.clip(labels_i32, 0, V - 1)
        return pl.pallas_call(
            _label_embed_gather_kernel,
            out_shape=jax.ShapeDtypeStruct((B, D), dtype),
            grid_spec=pltpu.PrefetchScalarGridSpec(
                num_scalar_prefetch=1,
                grid=(1,),
                in_specs=[pl.BlockSpec(memory_space=pl.ANY)],   # table in HBM
                out_specs=pl.BlockSpec((B, D), lambda i, lbl: (0, 0)),
                scratch_shapes=[pltpu.SemaphoreType.DMA((_GATHER_DMA_SLOTS,))],
            ),
            compiler_params=pltpu.CompilerParams(
                dimension_semantics=("arbitrary",)),
            cost_estimate=pl.CostEstimate(
                flops=0, transcendentals=0,
                bytes_accessed=2 * B * D * itemsize + B * 4),
        )(safe_labels, codebook)

    # ----- resident (one-hot MXU) path -----
    # Sublane-dense batch tiles: >=8 rows f32, >=16 bf16, >=32 int8.
    sub = max(8, 32 // itemsize)
    TB = _round_up(min(block_b, B), sub)
    B_pad = _round_up(B, TB)
    block_k = _round_up(block_k, 128)
    V_pad = _round_up(V, block_k)          # full MXU K-tiles, unmasked lanes

    if B_pad != B:
        labels_i32 = jnp.pad(labels_i32, (0, B_pad - B))   # padded rows -> row 0
    labels2 = labels_i32.reshape(B_pad, 1)
    table = codebook if V_pad == V else jnp.pad(codebook,
                                                ((0, V_pad - V), (0, 0)))

    # v5e default scoped VMEM is 16 MiB; raise the limit only when the
    # resident table + output tiles would not fit (large-D DiT-XL configs).
    vmem_est = (V_pad * D * itemsize                 # single-buffered table
                + 2 * TB * D * max(4, itemsize)      # double-buffered out + acc
                + 2 * B_pad * 128 * 4                # resident labels (lane pad)
                + (2 << 20))                         # one-hot / spill headroom
    vmem_limit = (int(min(vmem_est + (4 << 20), 48 << 20))
                  if vmem_est > (14 << 20) else None)

    out = pl.pallas_call(
        functools.partial(_label_embed_resident_kernel, block_k=block_k),
        out_shape=jax.ShapeDtypeStruct((B_pad, D), dtype),
        grid_spec=pltpu.PrefetchScalarGridSpec(
            num_scalar_prefetch=0,
            grid=(B_pad // TB,),
            in_specs=[
                # Whole label vector resident (constant index_map -> one DMA).
                pl.BlockSpec((B_pad, 1), lambda i: (0, 0)),
                # Codebook stays in HBM; copied once into the VMEM scratch.
                pl.BlockSpec(memory_space=pl.ANY),
            ],
            out_specs=pl.BlockSpec((TB, D), lambda i: (i, 0)),
            scratch_shapes=[
                pltpu.VMEM((V_pad, D), dtype),       # single-buffered table
                pltpu.SemaphoreType.DMA((1,)),
            ],
        ),
        compiler_params=pltpu.CompilerParams(
            # "arbitrary": step 0 fills the table scratch; splitting the grid
            # across v7x TensorCores would only duplicate the table load.
            dimension_semantics=("arbitrary",),
            vmem_limit_bytes=vmem_limit,
        ),
        cost_estimate=pl.CostEstimate(
            flops=2 * B_pad * V_pad * D,
            transcendentals=0,
            bytes_accessed=(V_pad * D + B_pad * D) * itemsize + B_pad * 4),
    )(labels2, table)

    return out if B_pad == B else out[:B]


# ----------------------------------------------------------------------------
# LabelEmbedder module in JAX.  CFG drop + Pallas gather fused in one jit.
# ----------------------------------------------------------------------------
@functools.partial(jax.jit,
                   static_argnames=("num_classes", "dropout_p", "training",
                                    "mode"))
def label_embedder_forward(labels, codebook, drop_key, *, num_classes,
                           dropout_p, training, mode="auto"):
    if training:
        # Matches torch: randn(B) < dropout_p  (NOT a Bernoulli(p) draw).
        drop_ids = jax.random.normal(drop_key, (labels.shape[0],)) < dropout_p
        labels = jnp.where(drop_ids, num_classes, labels)
    return label_embed_pallas(labels, codebook, mode=mode)


class LabelEmbedderJAX:
    def __init__(self, key, embed_dim=384, num_classes=1000, dropout=0.1,
                 dtype=jnp.float32):
        self.use_cfg = True                      # clf_free_guide
        self.num_classes = num_classes
        self.dropout_p = dropout
        # nn.Embedding default init: N(0, 1); extra row = CFG "null" token.
        self.codebook = jax.random.normal(
            key, (num_classes + int(self.use_cfg), embed_dim), dtype=dtype)

    def drop_tokens(self, key, labels):
        drop_ids = jax.random.normal(key, (labels.shape[0],)) < self.dropout_p
        return jnp.where(drop_ids, self.num_classes, labels)

    def __call__(self, labels, *, training=True, drop_key=None, mode="auto"):
        do_drop = bool(training and self.use_cfg)
        if do_drop:
            assert drop_key is not None
        else:
            drop_key = jax.random.PRNGKey(0)     # unused
        return label_embedder_forward(
            labels, self.codebook, drop_key,
            num_classes=self.num_classes, dropout_p=self.dropout_p,
            training=do_drop, mode=mode)


if __name__ == "__main__":
    root = jax.random.PRNGKey(0)
    k_table, k_labels, k_drop, k_labels2 = jax.random.split(root, 4)

    # Small, module-consistent shapes: batch=8 labels, 16 classes, embed_dim=128.
    num_classes, embed_dim, batch = 16, 128, 8
    embedder = LabelEmbedderJAX(k_table, embed_dim=embed_dim,
                                num_classes=num_classes, dropout=0.1)
    labels = jax.random.randint(k_labels, (batch,), 0, num_classes,
                                dtype=jnp.int32)

    # Training path: fused CFG token-drop + resident one-hot MXU gather.
    out = jax.block_until_ready(embedder(labels, training=True,
                                         drop_key=k_drop))
    assert out.shape == (batch, embed_dim)
    dropped = embedder.drop_tokens(k_drop, labels)
    ref = embedder.codebook[dropped]
    assert jnp.allclose(out, ref, rtol=1e-5, atol=1e-4), \
        "resident gather mismatch"

    # Eval path (no CFG drop).
    out_eval = jax.block_until_ready(embedder(labels, training=False))
    assert jnp.allclose(out_eval, embedder.codebook[labels],
                        rtol=1e-5, atol=1e-4)

    # Row-DMA gather path (B << V): bit-exact copy of the codebook rows.
    out_g = jax.block_until_ready(
        label_embed_pallas(dropped, embedder.codebook, mode="gather"))
    assert jnp.array_equal(out_g, ref), "DMA gather mismatch"

    # Multi-tile resident grid with batch padding (B=20, TB=8 -> 3 grid steps,
    # table loaded into the VMEM scratch once at step 0).
    labels20 = jax.random.randint(k_labels2, (20,), 0, num_classes,
                                  dtype=jnp.int32)
    out20 = jax.block_until_ready(
        label_embed_pallas(labels20, embedder.codebook, block_b=8,
                           mode="resident"))
    assert out20.shape == (20, embed_dim)
    assert jnp.allclose(out20, embedder.codebook[labels20],
                        rtol=1e-5, atol=1e-4)

    print("KERNEL_OK")
</pallas_src>

<mosaic_0001>
module attributes {stable_mosaic.version = 11 : i64} {
  func.func @_label_embed_resident_kernel(%arg0: i32, %arg1: memref<8x1xi32, #tpu.memory_space<vmem>>, %arg2: memref<256x128xf32, #tpu.memory_space<any>>, %arg3: memref<8x128xf32, #tpu.memory_space<vmem>>, %arg4: memref<256x128xf32, #tpu.memory_space<vmem>>, %arg5: memref<1x!tpu.dma_semaphore, #tpu.memory_space<semaphore_mem>>) attributes {dimension_semantics = [#tpu.dimension_semantics<arbitrary>], iteration_bounds = array<i64: 1>, scalar_prefetch = 0 : i64, scratch_operands = 2 : i64, tpu.core_type = #tpu.core_type<tc>, window_params = [{pipeline_mode = #tpu.pipeline_mode<synchronous>, transform_indices = @transform_0, window_bounds = array<i64: 8, 1>}, {}, {transform_indices = @transform_2, window_bounds = array<i64: 8, 128>}]} {
    %c0_i32 = arith.constant 0 : i32
    %0 = arith.cmpi eq, %arg0, %c0_i32 : i32
    %1 = arith.extui %0 : i1 to i32
    %c0_i32_0 = arith.constant 0 : i32
    %2 = arith.cmpi ne, %1, %c0_i32_0 : i32
    scf.if %2 {
      %c0_i32_7 = arith.constant 0 : i32
      %19 = tpu.memref_slice %arg5[%c0_i32_7] : memref<1x!tpu.dma_semaphore, #tpu.memory_space<semaphore_mem>> -> memref<1x!tpu.dma_semaphore, #tpu.memory_space<semaphore_mem>>
      %20 = tpu.memref_squeeze %19 : memref<1x!tpu.dma_semaphore, #tpu.memory_space<semaphore_mem>> -> memref<!tpu.dma_semaphore, #tpu.memory_space<semaphore_mem>>
      tpu.enqueue_dma source(%arg2 : memref<256x128xf32, #tpu.memory_space<any>>) target(%arg4 : memref<256x128xf32, #tpu.memory_space<vmem>>) target_semaphore(%20 : memref<!tpu.dma_semaphore, #tpu.memory_space<semaphore_mem>>)
      %c0_i32_8 = arith.constant 0 : i32
      %21 = tpu.memref_slice %arg5[%c0_i32_8] : memref<1x!tpu.dma_semaphore, #tpu.memory_space<semaphore_mem>> -> memref<1x!tpu.dma_semaphore, #tpu.memory_space<semaphore_mem>>
      %22 = tpu.memref_squeeze %21 : memref<1x!tpu.dma_semaphore, #tpu.memory_space<semaphore_mem>> -> memref<!tpu.dma_semaphore, #tpu.memory_space<semaphore_mem>>
      tpu.wait_dma2 semaphore(%22 : memref<!tpu.dma_semaphore, #tpu.memory_space<semaphore_mem>>) src(%arg2 : memref<256x128xf32, #tpu.memory_space<any>>) dst(%arg4 : memref<256x128xf32, #tpu.memory_space<vmem>>)
    } else {
    }
    %c8_i32 = arith.constant 8 : i32
    %3 = arith.muli %arg0, %c8_i32 : i32
    %4 = tpu.assume_multiple %3, 8 : i32
    %5 = arith.index_cast %4 : i32 to index
    %c0 = arith.constant 0 : index
    %6 = vector.load %arg1[%5, %c0] : memref<8x1xi32, #tpu.memory_space<vmem>>, vector<8x1xi32>
    %cst = arith.constant 0.000000e+00 : f32
    %7 = vector.broadcast %cst : f32 to vector<8x128xf32>
    %8 = tpu.iota {dimensions = array<i32: 1>} : vector<8x256xi32>
    %c0_i32_1 = arith.constant 0 : i32
    %9 = vector.broadcast %c0_i32_1 : i32 to vector<8x256xi32>
    %10 = arith.addi %9, %8 : vector<8x256xi32>
    %11 = vector.broadcast %6 : vector<8x1xi32> to vector<8x256xi32>
    %12 = arith.cmpi eq, %10, %11 : vector<8x256xi32>
    %13 = arith.extui %12 : vector<8x256xi1> to vector<8x256xi32>
    %14 = arith.sitofp %13 : vector<8x256xi32> to vector<8x256xf32>
    %c0_2 = arith.constant 0 : index
    %c0_3 = arith.constant 0 : index
    %15 = vector.load %arg4[%c0_2, %c0_3] : memref<256x128xf32, #tpu.memory_space<vmem>>, vector<256x128xf32>
    %cst_4 = arith.constant dense<0.000000e+00> : vector<8x128xf32>
    %16 = tpu.matmul %14, %15, %cst_4 {dimension_numbers = #tpu.dot_dimension_numbers<[1], [0], [0], [1], [0, 0, 1, 1], [], []>, precision = #tpu.contract_precision<fp32>} : vector<8x256xf32>, vector<256x128xf32>, vector<8x128xf32> -> vector<8x128xf32>
    %17 = arith.addf %7, %16 : vector<8x128xf32>
    %c0_5 = arith.constant 0 : index
    %c0_6 = arith.constant 0 : index
    %18 = vector.load %arg3[%c0_5, %c0_6] : memref<8x128xf32, #tpu.memory_space<vmem>>, vector<8x128xf32>
    tpu.vector_store %arg3[%c0_5, %c0_6], %17 {strides = array<i32>} : memref<8x128xf32, #tpu.memory_space<vmem>>, vector<8x128xf32>,
    return
  }
  func.func @transform_0(%arg0: i32) -> (i32, i32) {
    %c0_i32 = arith.constant 0 : i32
    %c0_i32_0 = arith.constant 0 : i32
    %c0_i32_1 = arith.constant 0 : i32
    return %c0_i32, %c0_i32_0 : i32, i32
  }
  func.func @transform_2(%arg0: i32) -> (i32, i32) {
    %c0_i32 = arith.constant 0 : i32
    %c0_i32_0 = arith.constant 0 : i32
    return %arg0, %c0_i32 : i32, i32
  }
}

</mosaic_0001>

<llo_original>
// kernel: label_embedder_forward.1
$region0: #{label_embedder_forward.1}
  #allocation0 [shape = 'u32[]', space=smem, size = 0x4, offset = 0x4, fixed_abs, tag = 'smem constant byte address 0x4 - core index']
  #allocation1 [shape = 'u32[144,128]{1,0:T(1,128)}', space=vmem, size = 0x12000, scoped, tag = 'internal scratch']
  #allocation2 [shape = 'f32[256,128]{1,0:T(8,128)}', space=vmem, size = 0x20000, scoped, tag = 'scratch operand']
  #allocation3 [shape = 's32[1]{0}', space=sflag, size = 0x4, scoped, tag = 'scratch operand']
  #allocation6 [shape = 's32[]', space=sflag, size = 0x4, offset = 0, fixed_abs, tag = 'sflag constant byte address 0x0 - dummy sync flag']
  %s0 = inlined_call_operand.vmem [shape: s32[8,1], index: 0, kind: input, shape index: {}]
  %s1 = inlined_call_operand.vmem [shape: f32[256,128], index: 1, kind: input, shape index: {}]
  %s2 = inlined_call_operand.hbm [shape: f32[8,128], index: 2, kind: output, shape index: {}]
  %s3 = sld [smem:[#allocation0]]
  $region52: #{label_embedder_forward.1} parent=0
    _
  %s5 = ssub.s32 1, %s3
  %s6 = scalar_select 0, %s5, %s3
  $region1: #{label_embedder_forward.1} parent=0
    #allocation4 [shape = 'u8[4096]{0}', space=vmem, size = 0x1000, scoped, tag = 'output window, operand 0, single buffered']
    #allocation5 [shape = 's32[1]{0}', space=sflag, size = 0x4, scoped, tag = 'scoped memory for label_embedder_forward.1']
    %7 = vsyncpa [#allocation5], 0
    // Predicated region
    $region2: #{label_embedder_forward.1} parent=1 // pred_check
      _
    $region3: #{label_embedder_forward.1} parent=1 // pred_check_branch
      %9 = sbr.rel (0) target = $region5
    $region4: #{label_embedder_forward.1} parent=1 // pred_region
      _
    $region5: #{label_embedder_forward.1} parent=1 // pred_fallthru
      _
    %p10 = scmp.eq.s32.totalorder 0, 0
    // Predicated region
    $region6: #{label_embedder_forward.1} parent=1 // pred_check
      %p11 = pneg %p10
    $region7: #{label_embedder_forward.1} parent=1 // pred_check_branch
      %13 = sbr.rel (%p11) target = $region9
    $region8: #{label_embedder_forward.1} parent=1 // pred_region
      %p15 = scmp.lt.u32.totalorder 256, 8
      %p16 = pneg %p15
      // Predicated region
      $region10: #{label_embedder_forward.1} parent=8 // pred_check
        _
      $region11: #{label_embedder_forward.1} parent=8 // pred_check_branch
        %18 = sbr.rel (%p15) target = $region13
      $region12: #{label_embedder_forward.1} parent=8 // pred_region
        %s34 = sand.u32 256, 7
        %p35 = scmp.eq.s32.totalorder %s34, 0
        // Predicated region
        $region25: #{label_embedder_forward.1} parent=12 // pred_check
          %p36 = pneg %p35
        $region26: #{label_embedder_forward.1} parent=12 // pred_check_branch
          %38 = sbr.rel (%p36) target = $region28
        $region27: #{label_embedder_forward.1} parent=12 // pred_region
          loop: start=0, step=1, limit=1
          $region29: #{label_embedder_forward.1} parent=27 // loop_pre_header
            _
          $region30: #{label_embedder_forward.1} parent=27 // loop_header
            %s40 = sphi 0, %s44
            %p41 = scmp.ge.s32.totalorder %s40, 1
            %s45 = sphi %s1, %s1
            %s46 = sphi [#allocation2], [#allocation2]
          $region31: #{label_embedder_forward.1} parent=27 // loop_header_branch
            %43 = sbr.rel (%p41) target = $region35
          $region32: #{label_embedder_forward.1} parent=27 // loop_body
            %v47 = vld [vmem:[%s45] sm:$0xff]
            %48 = vst [vmem:[%s46] sm:$0xff] %v47
            %v49 = vld [vmem:[%s45 + $0x8] sm:$0xff]
            %50 = vst [vmem:[%s46 + $0x8] sm:$0xff] %v49
            %v51 = vld [vmem:[%s45 + $0x10] sm:$0xff]
            %52 = vst [vmem:[%s46 + $0x10] sm:$0xff] %v51
            %v53 = vld [vmem:[%s45 + $0x18] sm:$0xff]
            %54 = vst [vmem:[%s46 + $0x18] sm:$0xff] %v53
            %v55 = vld [vmem:[%s45 + $0x20] sm:$0xff]
            %56 = vst [vmem:[%s46 + $0x20] sm:$0xff] %v55
            %v57 = vld [vmem:[%s45 + $0x28] sm:$0xff]
            %58 = vst [vmem:[%s46 + $0x28] sm:$0xff] %v57
            %v59 = vld [vmem:[%s45 + $0x30] sm:$0xff]
            %60 = vst [vmem:[%s46 + $0x30] sm:$0xff] %v59
            %v61 = vld [vmem:[%s45 + $0x38] sm:$0xff]
            %62 = vst [vmem:[%s46 + $0x38] sm:$0xff] %v61
            %v63 = vld [vmem:[%s45 + $0x40] sm:$0xff]
            %64 = vst [vmem:[%s46 + $0x40] sm:$0xff] %v63
            %v65 = vld [vmem:[%s45 + $0x48] sm:$0xff]
            %66 = vst [vmem:[%s46 + $0x48] sm:$0xff] %v65
            %v67 = vld [vmem:[%s45 + $0x50] sm:$0xff]
            %68 = vst [vmem:[%s46 + $0x50] sm:$0xff] %v67
            %v69 = vld [vmem:[%s45 + $0x58] sm:$0xff]
            %70 = vst [vmem:[%s46 + $0x58] sm:$0xff] %v69
            %v71 = vld [vmem:[%s45 + $0x60] sm:$0xff]
            %72 = vst [vmem:[%s46 + $0x60] sm:$0xff] %v71
            %v73 = vld [vmem:[%s45 + $0x68] sm:$0xff]
            %74 = vst [vmem:[%s46 + $0x68] sm:$0xff] %v73
            %v75 = vld [vmem:[%s45 + $0x70] sm:$0xff]
            %76 = vst [vmem:[%s46 + $0x70] sm:$0xff] %v75
            %v77 = vld [vmem:[%s45 + $0x78] sm:$0xff]
            %78 = vst [vmem:[%s46 + $0x78] sm:$0xff] %v77
            %v79 = vld [vmem:[%s45 + $0x80] sm:$0xff]
            %80 = vst [vmem:[%s46 + $0x80] sm:$0xff] %v79
            %v81 = vld [vmem:[%s45 + $0x88] sm:$0xff]
            %82 = vst [vmem:[%s46 + $0x88] sm:$0xff] %v81
            %v83 = vld [vmem:[%s45 + $0x90] sm:$0xff]
            %84 = vst [vmem:[%s46 + $0x90] sm:$0xff] %v83
            %v85 = vld [vmem:[%s45 + $0x98] sm:$0xff]
            %86 = vst [vmem:[%s46 + $0x98] sm:$0xff] %v85
            %v87 = vld [vmem:[%s45 + $0xa0] sm:$0xff]
            %88 = vst [vmem:[%s46 + $0xa0] sm:$0xff] %v87
            %v89 = vld [vmem:[%s45 + $0xa8] sm:$0xff]
            %90 = vst [vmem:[%s46 + $0xa8] sm:$0xff] %v89
            %v91 = vld [vmem:[%s45 + $0xb0] sm:$0xff]
            %92 = vst [vmem:[%s46 + $0xb0] sm:$0xff] %v91
            %v93 = vld [vmem:[%s45 + $0xb8] sm:$0xff]
            %94 = vst [vmem:[%s46 + $0xb8] sm:$0xff] %v93
            %v95 = vld [vmem:[%s45 + $0xc0] sm:$0xff]
            %96 = vst [vmem:[%s46 + $0xc0] sm:$0xff] %v95
            %v97 = vld [vmem:[%s45 + $0xc8] sm:$0xff]
            %98 = vst [vmem:[%s46 + $0xc8] sm:$0xff] %v97
            %v99 = vld [vmem:[%s45 + $0xd0] sm:$0xff]
            %100 = vst [vmem:[%s46 + $0xd0] sm:$0xff] %v99
            %v101 = vld [vmem:[%s45 + $0xd8] sm:$0xff]
            %102 = vst [vmem:[%s46 + $0xd8] sm:$0xff] %v101
            %v103 = vld [vmem:[%s45 + $0xe0] sm:$0xff]
            %104 = vst [vmem:[%s46 + $0xe0] sm:$0xff] %v103
            %v105 = vld [vmem:[%s45 + $0xe8] sm:$0xff]
            %106 = vst [vmem:[%s46 + $0xe8] sm:$0xff] %v105
            %v107 = vld [vmem:[%s45 + $0xf0] sm:$0xff]
            %108 = vst [vmem:[%s46 + $0xf0] sm:$0xff] %v107
            %v109 = vld [vmem:[%s45 + $0xf8] sm:$0xff]
            %110 = vst [vmem:[%s46 + $0xf8] sm:$0xff] %v109
          $region33: #{label_embedder_forward.1} parent=27 // loop_footer
            %s44 = sadd.s32 1, %s40
          $region34: #{label_embedder_forward.1} parent=27 // loop_footer_branch
            %39 = sbr.rel target = $region30
          $region35: #{label_embedder_forward.1} parent=27 // loop_exit
            _
        $region28: #{label_embedder_forward.1} parent=12 // pred_fallthru
          _
        %p111 = pneg %p35
        // Predicated region
        $region36: #{label_embedder_forward.1} parent=12 // pred_check
          _
        $region37: #{label_embedder_forward.1} parent=12 // pred_check_branch
          %113 = sbr.rel (%p35) target = $region39
        $region38: #{label_embedder_forward.1} parent=12 // pred_region
          %s114 = sand.u32 256, 7
        $region39: #{label_embedder_forward.1} parent=12 // pred_fallthru
          _
      $region13: #{label_embedder_forward.1} parent=8 // pred_fallthru
        _
      // Predicated region
      $region14: #{label_embedder_forward.1} parent=8 // pred_check
        %p19 = pneg %p15
      $region15: #{label_embedder_forward.1} parent=8 // pred_check_branch
        %21 = sbr.rel (%p19) target = $region17
      $region16: #{label_embedder_forward.1} parent=8 // pred_region
        %s22 = sshll.u32 1, 256
        %s23 = ssub.s32 %s22, 1
        loop: start=0, step=1, limit=1
        $region18: #{label_embedder_forward.1} parent=16 // loop_pre_header
          _
        $region19: #{label_embedder_forward.1} parent=16 // loop_header
          %s25 = sphi 0, %s29
          %p26 = scmp.ge.s32.totalorder %s25, 1
          %s30 = sphi %s1, %s1
          %s31 = sphi [#allocation2], [#allocation2]
        $region20: #{label_embedder_forward.1} parent=16 // loop_header_branch
          %28 = sbr.rel (%p26) target = $region24
        $region21: #{label_embedder_forward.1} parent=16 // loop_body
          %v32 = vld [vmem:[%s30] sm:%s23]
          %33 = vst [vmem:[%s31] sm:%s23] %v32
        $region22: #{label_embedder_forward.1} parent=16 // loop_footer
          %s29 = sadd.s32 1, %s25
        $region23: #{label_embedder_forward.1} parent=16 // loop_footer_branch
          %24 = sbr.rel target = $region19
        $region24: #{label_embedder_forward.1} parent=16 // loop_exit
          _
      $region17: #{label_embedder_forward.1} parent=8 // pred_fallthru
        _
      // Predicated region
      $region40: #{label_embedder_forward.1} parent=8 // pred_check
        _
      $region41: #{label_embedder_forward.1} parent=8 // pred_check_branch
        %117 = sbr.rel (0) target = $region43
      $region42: #{label_embedder_forward.1} parent=8 // pred_region
        %118 = vsyncadd [#allocation3], 4096
      $region43: #{label_embedder_forward.1} parent=8 // pred_fallthru
        _
      %s119 = smul.u32 256, 1
      %s120 = sshll.u32 %s119, 4
      %121 = dma.done [#allocation3], %s120
    $region9: #{label_embedder_forward.1} parent=1 // pred_fallthru
      _
    %s122 = smul.u32 0, 8
    %s123 = scalar_lea.vmem %s0, %s122
    %v124 = vld [vmem:[%s123] sm:$0xff]
    %v125 = vlaneseq
    %v126 = vand.u32 %v125, 127
    %v127 = vadd.s32 %v126, 128
    %128 = vset.pattern.permute.xlu0 0
    %129 = vperm.xlu0 %128, %v124
    %v130 = vpop.permute.xlu0 %129
    %vm131 = vcmp.eq.s32.totalorder %v126, %v130
    %vm132 = vcmp.eq.s32.totalorder %v127, %v130
    %v133 = vsel %vm131, 1, 0
    %v134 = vsel %vm132, 1, 0
    %v135 = vcvt.s32.f32 %v133
    %v136 = vcvt.s32.f32 %v134
    %v137 = vld [vmem:[#allocation2] sm:$0xff]
    %v138 = vld [vmem:[#allocation2 + $0x8] sm:$0xff]
    %v139 = vld [vmem:[#allocation2 + $0x10] sm:$0xff]
    %v140 = vld [vmem:[#allocation2 + $0x18] sm:$0xff]
    %v141 = vld [vmem:[#allocation2 + $0x20] sm:$0xff]
    %v142 = vld [vmem:[#allocation2 + $0x28] sm:$0xff]
    %v143 = vld [vmem:[#allocation2 + $0x30] sm:$0xff]
    %v144 = vld [vmem:[#allocation2 + $0x38] sm:$0xff]
    %v145 = vld [vmem:[#allocation2 + $0x40] sm:$0xff]
    %v146 = vld [vmem:[#allocation2 + $0x48] sm:$0xff]
    %v147 = vld [vmem:[#allocation2 + $0x50] sm:$0xff]
    %v148 = vld [vmem:[#allocation2 + $0x58] sm:$0xff]
    %v149 = vld [vmem:[#allocation2 + $0x60] sm:$0xff]
    %v150 = vld [vmem:[#allocation2 + $0x68] sm:$0xff]
    %v151 = vld [vmem:[#allocation2 + $0x70] sm:$0xff]
    %v152 = vld [vmem:[#allocation2 + $0x78] sm:$0xff]
    %v153 = vld [vmem:[#allocation2 + $0x80] sm:$0xff]
    %v154 = vld [vmem:[#allocation2 + $0x88] sm:$0xff]
    %v155 = vld [vmem:[#allocation2 + $0x90] sm:$0xff]
    %v156 = vld [vmem:[#allocation2 + $0x98] sm:$0xff]
    %v157 = vld [vmem:[#allocation2 + $0xa0] sm:$0xff]
    %v158 = vld [vmem:[#allocation2 + $0xa8] sm:$0xff]
    %v159 = vld [vmem:[#allocation2 + $0xb0] sm:$0xff]
    %v160 = vld [vmem:[#allocation2 + $0xb8] sm:$0xff]
    %v161 = vld [vmem:[#allocation2 + $0xc0] sm:$0xff]
    %v162 = vld [vmem:[#allocation2 + $0xc8] sm:$0xff]
    %v163 = vld [vmem:[#allocation2 + $0xd0] sm:$0xff]
    %v164 = vld [vmem:[#allocation2 + $0xd8] sm:$0xff]
    %v165 = vld [vmem:[#allocation2 + $0xe0] sm:$0xff]
    %v166 = vld [vmem:[#allocation2 + $0xe8] sm:$0xff]
    %v167 = vld [vmem:[#allocation2 + $0xf0] sm:$0xff]
    %v168 = vld [vmem:[#allocation2 + $0xf8] sm:$0xff]
    %169 = vmatprep.subr.mxu0 0.0
    %v170 = vand.u32 %v152, 4294901760
    %171 = vmatpush1.msra.mxu0 %v170
    %172 = vmatprep.subr.mxu0 0.0
    %v173 = vand.u32 %v151, 4294901760
    %174 = vmatpush1.msra.mxu0 %v173
    %175 = vmatprep.subr.mxu0 0.0
    %v176 = vand.u32 %v150, 4294901760
    %177 = vmatpush1.msra.mxu0 %v176
    %178 = vmatprep.subr.mxu0 0.0
    %v179 = vand.u32 %v149, 4294901760
    %180 = vmatpush1.msra.mxu0 %v179
    %181 = vmatprep.subr.mxu0 0.0
    %v182 = vand.u32 %v148, 4294901760
    %183 = vmatpush1.msra.mxu0 %v182
    %184 = vmatprep.subr.mxu0 0.0
    %v185 = vand.u32 %v147, 4294901760
    %186 = vmatpush1.msra.mxu0 %v185
    %187 = vmatprep.subr.mxu0 0.0
    %v188 = vand.u32 %v146, 4294901760
    %189 = vmatpush1.msra.mxu0 %v188
    %190 = vmatprep.subr.mxu0 0.0
    %v191 = vand.u32 %v145, 4294901760
    %192 = vmatpush1.msra.mxu0 %v191
    %193 = vmatprep.subr.mxu0 0.0
    %v194 = vand.u32 %v144, 4294901760
    %195 = vmatpush1.msra.mxu0 %v194
    %196 = vmatprep.subr.mxu0 0.0
    %v197 = vand.u32 %v143, 4294901760
    %198 = vmatpush1.msra.mxu0 %v197
    %199 = vmatprep.subr.mxu0 0.0
    %v200 = vand.u32 %v142, 4294901760
    %201 = vmatpush1.msra.mxu0 %v200
    %202 = vmatprep.subr.mxu0 0.0
    %v203 = vand.u32 %v141, 4294901760
    %204 = vmatpush1.msra.mxu0 %v203
    %205 = vmatprep.subr.mxu0 0.0
    %v206 = vand.u32 %v140, 4294901760
    %207 = vmatpush1.msra.mxu0 %v206
    %208 = vmatprep.subr.mxu0 0.0
    %v209 = vand.u32 %v139, 4294901760
    %210 = vmatpush1.msra.mxu0 %v209
    %211 = vmatprep.subr.mxu0 0.0
    %v212 = vand.u32 %v138, 4294901760
    %213 = vmatpush1.msra.mxu0 %v212
    %214 = vmatprep.subr.mxu0 0.0
    %v215 = vand.u32 %v137, 4294901760
    %216 = vmatpush1.msra.mxu0 %v215
    %217 = vmatprep.subr.mxu0 0.0
    %v218 = vand.u32 %v168, 4294901760
    %219 = vmatpush2.msra.mxu0 %v218
    %220 = vmatprep.subr.mxu0 0.0
    %v221 = vand.u32 %v167, 4294901760
    %222 = vmatpush2.msra.mxu0 %v221
    %223 = vmatprep.subr.mxu0 0.0
    %v224 = vand.u32 %v166, 4294901760
    %225 = vmatpush2.msra.mxu0 %v224
    %226 = vmatprep.subr.mxu0 0.0
    %v227 = vand.u32 %v165, 4294901760
    %228 = vmatpush2.msra.mxu0 %v227
    %229 = vmatprep.subr.mxu0 0.0
    %v230 = vand.u32 %v164, 4294901760
    %231 = vmatpush2.msra.mxu0 %v230
    %232 = vmatprep.subr.mxu0 0.0
    %v233 = vand.u32 %v163, 4294901760
    %234 = vmatpush2.msra.mxu0 %v233
    %235 = vmatprep.subr.mxu0 0.0
    %v236 = vand.u32 %v162, 4294901760
    %237 = vmatpush2.msra.mxu0 %v236
    %238 = vmatprep.subr.mxu0 0.0
    %v239 = vand.u32 %v161, 4294901760
    %240 = vmatpush2.msra.mxu0 %v239
    %241 = vmatprep.subr.mxu0 0.0
    %v242 = vand.u32 %v160, 4294901760
    %243 = vmatpush2.msra.mxu0 %v242
    %244 = vmatprep.subr.mxu0 0.0
    %v245 = vand.u32 %v159, 4294901760
    %246 = vmatpush2.msra.mxu0 %v245
    %247 = vmatprep.subr.mxu0 0.0
    %v248 = vand.u32 %v158, 4294901760
    %249 = vmatpush2.msra.mxu0 %v248
    %250 = vmatprep.subr.mxu0 0.0
    %v251 = vand.u32 %v157, 4294901760
    %252 = vmatpush2.msra.mxu0 %v251
    %253 = vmatprep.subr.mxu0 0.0
    %v254 = vand.u32 %v156, 4294901760
    %255 = vmatpush2.msra.mxu0 %v254
    %256 = vmatprep.subr.mxu0 0.0
    %v257 = vand.u32 %v155, 4294901760
    %258 = vmatpush2.msra.mxu0 %v257
    %259 = vmatprep.subr.mxu0 0.0
    %v260 = vand.u32 %v154, 4294901760
    %261 = vmatpush2.msra.mxu0 %v260
    %262 = vmatprep.subr.mxu0 0.0
    %v263 = vand.u32 %v153, 4294901760
    %264 = vmatpush2.msra.mxu0 %v263
    %v265 = vand.u32 %v136, 4294901760
    %v266 = vsub.f32 %v136, %v265
    %v267 = vand.u32 %v266, 4294901760
    %v268 = vsub.f32 %v266, %v267
    %v269 = vand.u32 %v268, 4294901760
    %270 = vmatprep.mubr.f32.mxu0 %v269
    %v271 = vand.u32 %v135, 4294901760
    %v272 = vsub.f32 %v135, %v271
    %v273 = vand.u32 %v272, 4294901760
    %v274 = vsub.f32 %v272, %v273
    %v275 = vand.u32 %v274, 4294901760
    %276 = vmatmul.mubr.f32.gmra.mxu0 %v275
    %v277 = vpop.f32.mrf.mxu0
    %v278 = vadd.f32 0.0, %v277
    %v279 = vpop.f32.mrf.mxu0
    %280 = vdwg.mxu0
    %281 = vmatprep.subr.mxu0 0.0
    %v282 = vand.u32 %v152, 4294901760
    %v283 = vsub.f32 %v152, %v282
    %v284 = vand.u32 %v283, 4294901760
    %v285 = vsub.f32 %v283, %v284
    %v286 = vand.u32 %v285, 4294901760
    %287 = vmatpush1.msra.mxu0 %v286
    %288 = vmatprep.subr.mxu0 0.0
    %v289 = vand.u32 %v151, 4294901760
    %v290 = vsub.f32 %v151, %v289
    %v291 = vand.u32 %v290, 4294901760
    %v292 = vsub.f32 %v290, %v291
    %v293 = vand.u32 %v292, 4294901760
    %294 = vmatpush1.msra.mxu0 %v293
    %295 = vmatprep.subr.mxu0 0.0
    %v296 = vand.u32 %v150, 4294901760
    %v297 = vsub.f32 %v150, %v296
    %v298 = vand.u32 %v297, 4294901760
    %v299 = vsub.f32 %v297, %v298
    %v300 = vand.u32 %v299, 4294901760
    %301 = vmatpush1.msra.mxu0 %v300
    %302 = vmatprep.subr.mxu0 0.0
    %v303 = vand.u32 %v149, 4294901760
    %v304 = vsub.f32 %v149, %v303
    %v305 = vand.u32 %v304, 4294901760
    %v306 = vsub.f32 %v304, %v305
    %v307 = vand.u32 %v306, 4294901760
    %308 = vmatpush1.msra.mxu0 %v307
    %309 = vmatprep.subr.mxu0 0.0
    %v310 = vand.u32 %v148, 4294901760
    %v311 = vsub.f32 %v148, %v310
    %v312 = vand.u32 %v311, 4294901760
    %v313 = vsub.f32 %v311, %v312
    %v314 = vand.u32 %v313, 4294901760
    %315 = vmatpush1.msra.mxu0 %v314
    %316 = vmatprep.subr.mxu0 0.0
    %v317 = vand.u32 %v147, 4294901760
    %v318 = vsub.f32 %v147, %v317
    %v319 = vand.u32 %v318, 4294901760
    %v320 = vsub.f32 %v318, %v319
    %v321 = vand.u32 %v320, 4294901760
    %322 = vmatpush1.msra.mxu0 %v321
    %323 = vmatprep.subr.mxu0 0.0
    %v324 = vand.u32 %v146, 4294901760
    %v325 = vsub.f32 %v146, %v324
    %v326 = vand.u32 %v325, 4294901760
    %v327 = vsub.f32 %v325, %v326
    %v328 = vand.u32 %v327, 4294901760
    %329 = vmatpush1.msra.mxu0 %v328
    %330 = vmatprep.subr.mxu0 0.0
    %v331 = vand.u32 %v145, 4294901760
    %v332 = vsub.f32 %v145, %v331
    %v333 = vand.u32 %v332, 4294901760
    %v334 = vsub.f32 %v332, %v333
    %v335 = vand.u32 %v334, 4294901760
    %336 = vmatpush1.msra.mxu0 %v335
    %337 = vmatprep.subr.mxu0 0.0
    %v338 = vand.u32 %v144, 4294901760
    %v339 = vsub.f32 %v144, %v338
    %v340 = vand.u32 %v339, 4294901760
    %v341 = vsub.f32 %v339, %v340
    %v342 = vand.u32 %v341, 4294901760
    %343 = vmatpush1.msra.mxu0 %v342
    %344 = vmatprep.subr.mxu0 0.0
    %v345 = vand.u32 %v143, 4294901760
    %v346 = vsub.f32 %v143, %v345
    %v347 = vand.u32 %v346, 4294901760
    %v348 = vsub.f32 %v346, %v347
    %v349 = vand.u32 %v348, 4294901760
    %350 = vmatpush1.msra.mxu0 %v349
    %351 = vmatprep.subr.mxu0 0.0
    %v352 = vand.u32 %v142, 4294901760
    %v353 = vsub.f32 %v142, %v352
    %v354 = vand.u32 %v353, 4294901760
    %v355 = vsub.f32 %v353, %v354
    %v356 = vand.u32 %v355, 4294901760
    %357 = vmatpush1.msra.mxu0 %v356
    %358 = vmatprep.subr.mxu0 0.0
    %v359 = vand.u32 %v141, 4294901760
    %v360 = vsub.f32 %v141, %v359
    %v361 = vand.u32 %v360, 4294901760
    %v362 = vsub.f32 %v360, %v361
    %v363 = vand.u32 %v362, 4294901760
    %364 = vmatpush1.msra.mxu0 %v363
    %365 = vmatprep.subr.mxu0 0.0
    %v366 = vand.u32 %v140, 4294901760
    %v367 = vsub.f32 %v140, %v366
    %v368 = vand.u32 %v367, 4294901760
    %v369 = vsub.f32 %v367, %v368
    %v370 = vand.u32 %v369, 4294901760
    %371 = vmatpush1.msra.mxu0 %v370
    %372 = vmatprep.subr.mxu0 0.0
    %v373 = vand.u32 %v139, 4294901760
    %v374 = vsub.f32 %v139, %v373
    %v375 = vand.u32 %v374, 4294901760
    %v376 = vsub.f32 %v374, %v375
    %v377 = vand.u32 %v376, 4294901760
    %378 = vmatpush1.msra.mxu0 %v377
    %379 = vmatprep.subr.mxu0 0.0
    %v380 = vand.u32 %v138, 4294901760
    %v381 = vsub.f32 %v138, %v380
    %v382 = vand.u32 %v381, 4294901760
    %v383 = vsub.f32 %v381, %v382
    %v384 = vand.u32 %v383, 4294901760
    %385 = vmatpush1.msra.mxu0 %v384
    %386 = vmatprep.subr.mxu0 0.0
    %v387 = vand.u32 %v137, 4294901760
    %v388 = vsub.f32 %v137, %v387
    %v389 = vand.u32 %v388, 4294901760
    %v390 = vsub.f32 %v388, %v389
    %v391 = vand.u32 %v390, 4294901760
    %392 = vmatpush1.msra.mxu0 %v391
    %393 = vmatprep.subr.mxu0 0.0
    %v394 = vand.u32 %v168, 4294901760
    %v395 = vsub.f32 %v168, %v394
    %v396 = vand.u32 %v395, 4294901760
    %v397 = vsub.f32 %v395, %v396
    %v398 = vand.u32 %v397, 4294901760
    %399 = vmatpush2.msra.mxu0 %v398
    %400 = vmatprep.subr.mxu0 0.0
    %v401 = vand.u32 %v167, 4294901760
    %v402 = vsub.f32 %v167, %v401
    %v403 = vand.u32 %v402, 4294901760
    %v404 = vsub.f32 %v402, %v403
    %v405 = vand.u32 %v404, 4294901760
    %406 = vmatpush2.msra.mxu0 %v405
    %407 = vmatprep.subr.mxu0 0.0
    %v408 = vand.u32 %v166, 4294901760
    %v409 = vsub.f32 %v166, %v408
    %v410 = vand.u32 %v409, 4294901760
    %v411 = vsub.f32 %v409, %v410
    %v412 = vand.u32 %v411, 4294901760
    %413 = vmatpush2.msra.mxu0 %v412
    %414 = vmatprep.subr.mxu0 0.0
    %v415 = vand.u32 %v165, 4294901760
    %v416 = vsub.f32 %v165, %v415
    %v417 = vand.u32 %v416, 4294901760
    %v418 = vsub.f32 %v416, %v417
    %v419 = vand.u32 %v418, 4294901760
    %420 = vmatpush2.msra.mxu0 %v419
    %421 = vmatprep.subr.mxu0 0.0
    %v422 = vand.u32 %v164, 4294901760
    %v423 = vsub.f32 %v164, %v422
    %v424 = vand.u32 %v423, 4294901760
    %v425 = vsub.f32 %v423, %v424
    %v426 = vand.u32 %v425, 4294901760
    %427 = vmatpush2.msra.mxu0 %v426
    %428 = vmatprep.subr.mxu0 0.0
    %v429 = vand.u32 %v163, 4294901760
    %v430 = vsub.f32 %v163, %v429
    %v431 = vand.u32 %v430, 4294901760
    %v432 = vsub.f32 %v430, %v431
    %v433 = vand.u32 %v432, 4294901760
    %434 = vmatpush2.msra.mxu0 %v433
    %435 = vmatprep.subr.mxu0 0.0
    %v436 = vand.u32 %v162, 4294901760
    %v437 = vsub.f32 %v162, %v436
    %v438 = vand.u32 %v437, 4294901760
    %v439 = vsub.f32 %v437, %v438
    %v440 = vand.u32 %v439, 4294901760
    %441 = vmatpush2.msra.mxu0 %v440
    %442 = vmatprep.subr.mxu0 0.0
    %v443 = vand.u32 %v161, 4294901760
    %v444 = vsub.f32 %v161, %v443
    %v445 = vand.u32 %v444, 4294901760
    %v446 = vsub.f32 %v444, %v445
    %v447 = vand.u32 %v446, 4294901760
    %448 = vmatpush2.msra.mxu0 %v447
    %449 = vmatprep.subr.mxu0 0.0
    %v450 = vand.u32 %v160, 4294901760
    %v451 = vsub.f32 %v160, %v450
    %v452 = vand.u32 %v451, 4294901760
    %v453 = vsub.f32 %v451, %v452
    %v454 = vand.u32 %v453, 4294901760
    %455 = vmatpush2.msra.mxu0 %v454
    %456 = vmatprep.subr.mxu0 0.0
    %v457 = vand.u32 %v159, 4294901760
    %v458 = vsub.f32 %v159, %v457
    %v459 = vand.u32 %v458, 4294901760
    %v460 = vsub.f32 %v458, %v459
    %v461 = vand.u32 %v460, 4294901760
    %462 = vmatpush2.msra.mxu0 %v461
    %463 = vmatprep.subr.mxu0 0.0
    %v464 = vand.u32 %v158, 4294901760
    %v465 = vsub.f32 %v158, %v464
    %v466 = vand.u32 %v465, 4294901760
    %v467 = vsub.f32 %v465, %v466
    %v468 = vand.u32 %v467, 4294901760
    %469 = vmatpush2.msra.mxu0 %v468
    %470 = vmatprep.subr.mxu0 0.0
    %v471 = vand.u32 %v157, 4294901760
    %v472 = vsub.f32 %v157, %v471
    %v473 = vand.u32 %v472, 4294901760
    %v474 = vsub.f32 %v472, %v473
    %v475 = vand.u32 %v474, 4294901760
    %476 = vmatpush2.msra.mxu0 %v475
    %477 = vmatprep.subr.mxu0 0.0
    %v478 = vand.u32 %v156, 4294901760
    %v479 = vsub.f32 %v156, %v478
    %v480 = vand.u32 %v479, 4294901760
    %v481 = vsub.f32 %v479, %v480
    %v482 = vand.u32 %v481, 4294901760
    %483 = vmatpush2.msra.mxu0 %v482
    %484 = vmatprep.subr.mxu0 0.0
    %v485 = vand.u32 %v155, 4294901760
    %v486 = vsub.f32 %v155, %v485
    %v487 = vand.u32 %v486, 4294901760
    %v488 = vsub.f32 %v486, %v487
    %v489 = vand.u32 %v488, 4294901760
    %490 = vmatpush2.msra.mxu0 %v489
    %491 = vmatprep.subr.mxu0 0.0
    %v492 = vand.u32 %v154, 4294901760
    %v493 = vsub.f32 %v154, %v492
    %v494 = vand.u32 %v493, 4294901760
    %v495 = vsub.f32 %v493, %v494
    %v496 = vand.u32 %v495, 4294901760
    %497 = vmatpush2.msra.mxu0 %v496
    %498 = vmatprep.subr.mxu0 0.0
    %v499 = vand.u32 %v153, 4294901760
    %v500 = vsub.f32 %v153, %v499
    %v501 = vand.u32 %v500, 4294901760
    %v502 = vsub.f32 %v500, %v501
    %v503 = vand.u32 %v502, 4294901760
    %504 = vmatpush2.msra.mxu0 %v503
    %v505 = vand.u32 %v136, 4294901760
    %506 = vmatprep.mubr.f32.mxu0 %v505
    %v507 = vand.u32 %v135, 4294901760
    %508 = vmatmul.mubr.f32.gmra.mxu0 %v507
    %v509 = vpop.f32.mrf.mxu0
    %v510 = vadd.f32 %v278, %v509
    %v511 = vpop.f32.mrf.mxu0
    %512 = vdwg.mxu0
    %513 = vmatprep.subr.mxu0 0.0
    %v514 = vand.u32 %v152, 4294901760
    %v515 = vsub.f32 %v152, %v514
    %516 = vmatpush1.msra.mxu0 %v515
    %517 = vmatprep.subr.mxu0 0.0
    %v518 = vand.u32 %v151, 4294901760
    %v519 = vsub.f32 %v151, %v518
    %520 = vmatpush1.msra.mxu0 %v519
    %521 = vmatprep.subr.mxu0 0.0
    %v522 = vand.u32 %v150, 4294901760
    %v523 = vsub.f32 %v150, %v522
    %524 = vmatpush1.msra.mxu0 %v523
    %525 = vmatprep.subr.mxu0 0.0
    %v526 = vand.u32 %v149, 4294901760
    %v527 = vsub.f32 %v149, %v526
    %528 = vmatpush1.msra.mxu0 %v527
    %529 = vmatprep.subr.mxu0 0.0
    %v530 = vand.u32 %v148, 4294901760
    %v531 = vsub.f32 %v148, %v530
    %532 = vmatpush1.msra.mxu0 %v531
    %533 = vmatprep.subr.mxu0 0.0
    %v534 = vand.u32 %v147, 4294901760
    %v535 = vsub.f32 %v147, %v534
    %536 = vmatpush1.msra.mxu0 %v535
    %537 = vmatprep.subr.mxu0 0.0
    %v538 = vand.u32 %v146, 4294901760
    %v539 = vsub.f32 %v146, %v538
    %540 = vmatpush1.msra.mxu0 %v539
    %541 = vmatprep.subr.mxu0 0.0
    %v542 = vand.u32 %v145, 4294901760
    %v543 = vsub.f32 %v145, %v542
    %544 = vmatpush1.msra.mxu0 %v543
    %545 = vmatprep.subr.mxu0 0.0
    %v546 = vand.u32 %v144, 4294901760
    %v547 = vsub.f32 %v144, %v546
    %548 = vmatpush1.msra.mxu0 %v547
    %549 = vmatprep.subr.mxu0 0.0
    %v550 = vand.u32 %v143, 4294901760
    %v551 = vsub.f32 %v143, %v550
    %552 = vmatpush1.msra.mxu0 %v551
    %553 = vmatprep.subr.mxu0 0.0
    %v554 = vand.u32 %v142, 4294901760
    %v555 = vsub.f32 %v142, %v554
    %556 = vmatpush1.msra.mxu0 %v555
    %557 = vmatprep.subr.mxu0 0.0
    %v558 = vand.u32 %v141, 4294901760
    %v559 = vsub.f32 %v141, %v558
    %560 = vmatpush1.msra.mxu0 %v559
    %561 = vmatprep.subr.mxu0 0.0
    %v562 = vand.u32 %v140, 4294901760
    %v563 = vsub.f32 %v140, %v562
    %564 = vmatpush1.msra.mxu0 %v563
    %565 = vmatprep.subr.mxu0 0.0
    %v566 = vand.u32 %v139, 4294901760
    %v567 = vsub.f32 %v139, %v566
    %568 = vmatpush1.msra.mxu0 %v567
    %569 = vmatprep.subr.mxu0 0.0
    %v570 = vand.u32 %v138, 4294901760
    %v571 = vsub.f32 %v138, %v570
    %572 = vmatpush1.msra.mxu0 %v571
    %573 = vmatprep.subr.mxu0 0.0
    %v574 = vand.u32 %v137, 4294901760
    %v575 = vsub.f32 %v137, %v574
    %576 = vmatpush1.msra.mxu0 %v575
    %577 = vmatprep.subr.mxu0 0.0
    %v578 = vand.u32 %v168, 4294901760
    %v579 = vsub.f32 %v168, %v578
    %580 = vmatpush2.msra.mxu0 %v579
    %581 = vmatprep.subr.mxu0 0.0
    %v582 = vand.u32 %v167, 4294901760
    %v583 = vsub.f32 %v167, %v582
    %584 = vmatpush2.msra.mxu0 %v583
    %585 = vmatprep.subr.mxu0 0.0
    %v586 = vand.u32 %v166, 4294901760
    %v587 = vsub.f32 %v166, %v586
    %588 = vmatpush2.msra.mxu0 %v587
    %589 = vmatprep.subr.mxu0 0.0
    %v590 = vand.u32 %v165, 4294901760
    %v591 = vsub.f32 %v165, %v590
    %592 = vmatpush2.msra.mxu0 %v591
    %593 = vmatprep.subr.mxu0 0.0
    %v594 = vand.u32 %v164, 4294901760
    %v595 = vsub.f32 %v164, %v594
    %596 = vmatpush2.msra.mxu0 %v595
    %597 = vmatprep.subr.mxu0 0.0
    %v598 = vand.u32 %v163, 4294901760
    %v599 = vsub.f32 %v163, %v598
    %600 = vmatpush2.msra.mxu0 %v599
    %601 = vmatprep.subr.mxu0 0.0
    %v602 = vand.u32 %v162, 4294901760
    %v603 = vsub.f32 %v162, %v602
    %604 = vmatpush2.msra.mxu0 %v603
    %605 = vmatprep.subr.mxu0 0.0
    %v606 = vand.u32 %v161, 4294901760
    %v607 = vsub.f32 %v161, %v606
    %608 = vmatpush2.msra.mxu0 %v607
    %609 = vmatprep.subr.mxu0 0.0
    %v610 = vand.u32 %v160, 4294901760
    %v611 = vsub.f32 %v160, %v610
    %612 = vmatpush2.msra.mxu0 %v611
    %613 = vmatprep.subr.mxu0 0.0
    %v614 = vand.u32 %v159, 4294901760
    %v615 = vsub.f32 %v159, %v614
    %616 = vmatpush2.msra.mxu0 %v615
    %617 = vmatprep.subr.mxu0 0.0
    %v618 = vand.u32 %v158, 4294901760
    %v619 = vsub.f32 %v158, %v618
    %620 = vmatpush2.msra.mxu0 %v619
    %621 = vmatprep.subr.mxu0 0.0
    %v622 = vand.u32 %v157, 4294901760
    %v623 = vsub.f32 %v157, %v622
    %624 = vmatpush2.msra.mxu0 %v623
    %625 = vmatprep.subr.mxu0 0.0
    %v626 = vand.u32 %v156, 4294901760
    %v627 = vsub.f32 %v156, %v626
    %628 = vmatpush2.msra.mxu0 %v627
    %629 = vmatprep.subr.mxu0 0.0
    %v630 = vand.u32 %v155, 4294901760
    %v631 = vsub.f32 %v155, %v630
    %632 = vmatpush2.msra.mxu0 %v631
    %633 = vmatprep.subr.mxu0 0.0
    %v634 = vand.u32 %v154, 4294901760
    %v635 = vsub.f32 %v154, %v634
    %636 = vmatpush2.msra.mxu0 %v635
    %637 = vmatprep.subr.mxu0 0.0
    %v638 = vand.u32 %v153, 4294901760
    %v639 = vsub.f32 %v153, %v638
    %640 = vmatpush2.msra.mxu0 %v639
    %v641 = vand.u32 %v136, 4294901760
    %v642 = vsub.f32 %v136, %v641
    %643 = vmatprep.mubr.f32.mxu0 %v642
    %v644 = vand.u32 %v135, 4294901760
    %v645 = vsub.f32 %v135, %v644
    %646 = vmatmul.mubr.f32.gmra.mxu0 %v645
    %v647 = vpop.f32.mrf.mxu0
    %v648 = vadd.f32 %v510, %v647
    %v649 = vpop.f32.mrf.mxu0
    %650 = vdwg.mxu0
    %651 = vmatprep.subr.mxu0 0.0
    %v652 = vand.u32 %v152, 4294901760
    %653 = vmatpush1.msra.mxu0 %v652
    %654 = vmatprep.subr.mxu0 0.0
    %v655 = vand.u32 %v151, 4294901760
    %656 = vmatpush1.msra.mxu0 %v655
    %657 = vmatprep.subr.mxu0 0.0
    %v658 = vand.u32 %v150, 4294901760
    %659 = vmatpush1.msra.mxu0 %v658
    %660 = vmatprep.subr.mxu0 0.0
    %v661 = vand.u32 %v149, 4294901760
    %662 = vmatpush1.msra.mxu0 %v661
    %663 = vmatprep.subr.mxu0 0.0
    %v664 = vand.u32 %v148, 4294901760
    %665 = vmatpush1.msra.mxu0 %v664
    %666 = vmatprep.subr.mxu0 0.0
    %v667 = vand.u32 %v147, 4294901760
    %668 = vmatpush1.msra.mxu0 %v667
    %669 = vmatprep.subr.mxu0 0.0
    %v670 = vand.u32 %v146, 4294901760
    %671 = vmatpush1.msra.mxu0 %v670
    %672 = vmatprep.subr.mxu0 0.0
    %v673 = vand.u32 %v145, 4294901760
    %674 = vmatpush1.msra.mxu0 %v673
    %675 = vmatprep.subr.mxu0 0.0
    %v676 = vand.u32 %v144, 4294901760
    %677 = vmatpush1.msra.mxu0 %v676
    %678 = vmatprep.subr.mxu0 0.0
    %v679 = vand.u32 %v143, 4294901760
    %680 = vmatpush1.msra.mxu0 %v679
    %681 = vmatprep.subr.mxu0 0.0
    %v682 = vand.u32 %v142, 4294901760
    %683 = vmatpush1.msra.mxu0 %v682
    %684 = vmatprep.subr.mxu0 0.0
    %v685 = vand.u32 %v141, 4294901760
    %686 = vmatpush1.msra.mxu0 %v685
    %687 = vmatprep.subr.mxu0 0.0
    %v688 = vand.u32 %v140, 4294901760
    %689 = vmatpush1.msra.mxu0 %v688
    %690 = vmatprep.subr.mxu0 0.0
    %v691 = vand.u32 %v139, 4294901760
    %692 = vmatpush1.msra.mxu0 %v691
    %693 = vmatprep.subr.mxu0 0.0
    %v694 = vand.u32 %v138, 4294901760
    %695 = vmatpush1.msra.mxu0 %v694
    %696 = vmatprep.subr.mxu0 0.0
    %v697 = vand.u32 %v137, 4294901760
    %698 = vmatpush1.msra.mxu0 %v697
    %699 = vmatprep.subr.mxu0 0.0
    %v700 = vand.u32 %v168, 4294901760
    %701 = vmatpush2.msra.mxu0 %v700
    %702 = vmatprep.subr.mxu0 0.0
    %v703 = vand.u32 %v167, 4294901760
    %704 = vmatpush2.msra.mxu0 %v703
    %705 = vmatprep.subr.mxu0 0.0
    %v706 = vand.u32 %v166, 4294901760
    %707 = vmatpush2.msra.mxu0 %v706
    %708 = vmatprep.subr.mxu0 0.0
    %v709 = vand.u32 %v165, 4294901760
    %710 = vmatpush2.msra.mxu0 %v709
    %711 = vmatprep.subr.mxu0 0.0
    %v712 = vand.u32 %v164, 4294901760
    %713 = vmatpush2.msra.mxu0 %v712
    %714 = vmatprep.subr.mxu0 0.0
    %v715 = vand.u32 %v163, 4294901760
    %716 = vmatpush2.msra.mxu0 %v715
    %717 = vmatprep.subr.mxu0 0.0
    %v718 = vand.u32 %v162, 4294901760
    %719 = vmatpush2.msra.mxu0 %v718
    %720 = vmatprep.subr.mxu0 0.0
    %v721 = vand.u32 %v161, 4294901760
    %722 = vmatpush2.msra.mxu0 %v721
    %723 = vmatprep.subr.mxu0 0.0
    %v724 = vand.u32 %v160, 4294901760
    %725 = vmatpush2.msra.mxu0 %v724
    %726 = vmatprep.subr.mxu0 0.0
    %v727 = vand.u32 %v159, 4294901760
    %728 = vmatpush2.msra.mxu0 %v727
    %729 = vmatprep.subr.mxu0 0.0
    %v730 = vand.u32 %v158, 4294901760
    %731 = vmatpush2.msra.mxu0 %v730
    %732 = vmatprep.subr.mxu0 0.0
    %v733 = vand.u32 %v157, 4294901760
    %734 = vmatpush2.msra.mxu0 %v733
    %735 = vmatprep.subr.mxu0 0.0
    %v736 = vand.u32 %v156, 4294901760
    %737 = vmatpush2.msra.mxu0 %v736
    %738 = vmatprep.subr.mxu0 0.0
    %v739 = vand.u32 %v155, 4294901760
    %740 = vmatpush2.msra.mxu0 %v739
    %741 = vmatprep.subr.mxu0 0.0
    %v742 = vand.u32 %v154, 4294901760
    %743 = vmatpush2.msra.mxu0 %v742
    %744 = vmatprep.subr.mxu0 0.0
    %v745 = vand.u32 %v153, 4294901760
    %746 = vmatpush2.msra.mxu0 %v745
    %v747 = vand.u32 %v136, 4294901760
    %v748 = vsub.f32 %v136, %v747
    %v749 = vand.u32 %v748, 4294901760
    %750 = vmatprep.mubr.f32.mxu0 %v749
    %v751 = vand.u32 %v135, 4294901760
    %v752 = vsub.f32 %v135, %v751
    %v753 = vand.u32 %v752, 4294901760
    %754 = vmatmul.mubr.f32.gmra.mxu0 %v753
    %v755 = vpop.f32.mrf.mxu0
    %v756 = vadd.f32 %v648, %v755
    %v757 = vpop.f32.mrf.mxu0
    %758 = vdwg.mxu0
    %759 = vmatprep.subr.mxu0 0.0
    %v760 = vand.u32 %v152, 4294901760
    %v761 = vsub.f32 %v152, %v760
    %v762 = vand.u32 %v761, 4294901760
    %763 = vmatpush1.msra.mxu0 %v762
    %764 = vmatprep.subr.mxu0 0.0
    %v765 = vand.u32 %v151, 4294901760
    %v766 = vsub.f32 %v151, %v765
    %v767 = vand.u32 %v766, 4294901760
    %768 = vmatpush1.msra.mxu0 %v767
    %769 = vmatprep.subr.mxu0 0.0
    %v770 = vand.u32 %v150, 4294901760
    %v771 = vsub.f32 %v150, %v770
    %v772 = vand.u32 %v771, 4294901760
    %773 = vmatpush1.msra.mxu0 %v772
    %774 = vmatprep.subr.mxu0 0.0
    %v775 = vand.u32 %v149, 4294901760
    %v776 = vsub.f32 %v149, %v775
    %v777 = vand.u32 %v776, 4294901760
    %778 = vmatpush1.msra.mxu0 %v777
    %779 = vmatprep.subr.mxu0 0.0
    %v780 = vand.u32 %v148, 4294901760
    %v781 = vsub.f32 %v148, %v780
    %v782 = vand.u32 %v781, 4294901760
    %783 = vmatpush1.msra.mxu0 %v782
    %784 = vmatprep.subr.mxu0 0.0
    %v785 = vand.u32 %v147, 4294901760
    %v786 = vsub.f32 %v147, %v785
    %v787 = vand.u32 %v786, 4294901760
    %788 = vmatpush1.msra.mxu0 %v787
    %789 = vmatprep.subr.mxu0 0.0
    %v790 = vand.u32 %v146, 4294901760
    %v791 = vsub.f32 %v146, %v790
    %v792 = vand.u32 %v791, 4294901760
    %793 = vmatpush1.msra.mxu0 %v792
    %794 = vmatprep.subr.mxu0 0.0
    %v795 = vand.u32 %v145, 4294901760
    %v796 = vsub.f32 %v145, %v795
    %v797 = vand.u32 %v796, 4294901760
    %798 = vmatpush1.msra.mxu0 %v797
    %799 = vmatprep.subr.mxu0 0.0
    %v800 = vand.u32 %v144, 4294901760
    %v801 = vsub.f32 %v144, %v800
    %v802 = vand.u32 %v801, 4294901760
    %803 = vmatpush1.msra.mxu0 %v802
    %804 = vmatprep.subr.mxu0 0.0
    %v805 = vand.u32 %v143, 4294901760
    %v806 = vsub.f32 %v143, %v805
    %v807 = vand.u32 %v806, 4294901760
    %808 = vmatpush1.msra.mxu0 %v807
    %809 = vmatprep.subr.mxu0 0.0
    %v810 = vand.u32 %v142, 4294901760
    %v811 = vsub.f32 %v142, %v810
    %v812 = vand.u32 %v811, 4294901760
    %813 = vmatpush1.msra.mxu0 %v812
    %814 = vmatprep.subr.mxu0 0.0
    %v815 = vand.u32 %v141, 4294901760
    %v816 = vsub.f32 %v141, %v815
    %v817 = vand.u32 %v816, 4294901760
    %818 = vmatpush1.msra.mxu0 %v817
    %819 = vmatprep.subr.mxu0 0.0
    %v820 = vand.u32 %v140, 4294901760
    %v821 = vsub.f32 %v140, %v820
    %v822 = vand.u32 %v821, 4294901760
    %823 = vmatpush1.msra.mxu0 %v822
    %824 = vmatprep.subr.mxu0 0.0
    %v825 = vand.u32 %v139, 4294901760
    %v826 = vsub.f32 %v139, %v825
    %v827 = vand.u32 %v826, 4294901760
    %828 = vmatpush1.msra.mxu0 %v827
    %829 = vmatprep.subr.mxu0 0.0
    %v830 = vand.u32 %v138, 4294901760
    %v831 = vsub.f32 %v138, %v830
    %v832 = vand.u32 %v831, 4294901760
    %833 = vmatpush1.msra.mxu0 %v832
    %834 = vmatprep.subr.mxu0 0.0
    %v835 = vand.u32 %v137, 4294901760
    %v836 = vsub.f32 %v137, %v835
    %v837 = vand.u32 %v836, 4294901760
    %838 = vmatpush1.msra.mxu0 %v837
    %839 = vmatprep.subr.mxu0 0.0
    %v840 = vand.u32 %v168, 4294901760
    %v841 = vsub.f32 %v168, %v840
    %v842 = vand.u32 %v841, 4294901760
    %843 = vmatpush2.msra.mxu0 %v842
    %844 = vmatprep.subr.mxu0 0.0
    %v845 = vand.u32 %v167, 4294901760
    %v846 = vsub.f32 %v167, %v845
    %v847 = vand.u32 %v846, 4294901760
    %848 = vmatpush2.msra.mxu0 %v847
    %849 = vmatprep.subr.mxu0 0.0
    %v850 = vand.u32 %v166, 4294901760
    %v851 = vsub.f32 %v166, %v850
    %v852 = vand.u32 %v851, 4294901760
    %853 = vmatpush2.msra.mxu0 %v852
    %854 = vmatprep.subr.mxu0 0.0
    %v855 = vand.u32 %v165, 4294901760
    %v856 = vsub.f32 %v165, %v855
    %v857 = vand.u32 %v856, 4294901760
    %858 = vmatpush2.msra.mxu0 %v857
    %859 = vmatprep.subr.mxu0 0.0
    %v860 = vand.u32 %v164, 4294901760
    %v861 = vsub.f32 %v164, %v860
    %v862 = vand.u32 %v861, 4294901760
    %863 = vmatpush2.msra.mxu0 %v862
    %864 = vmatprep.subr.mxu0 0.0
    %v865 = vand.u32 %v163, 4294901760
    %v866 = vsub.f32 %v163, %v865
    %v867 = vand.u32 %v866, 4294901760
    %868 = vmatpush2.msra.mxu0 %v867
    %869 = vmatprep.subr.mxu0 0.0
    %v870 = vand.u32 %v162, 4294901760
    %v871 = vsub.f32 %v162, %v870
    %v872 = vand.u32 %v871, 4294901760
    %873 = vmatpush2.msra.mxu0 %v872
    %874 = vmatprep.subr.mxu0 0.0
    %v875 = vand.u32 %v161, 4294901760
    %v876 = vsub.f32 %v161, %v875
    %v877 = vand.u32 %v876, 4294901760
    %878 = vmatpush2.msra.mxu0 %v877
    %879 = vmatprep.subr.mxu0 0.0
    %v880 = vand.u32 %v160, 4294901760
    %v881 = vsub.f32 %v160, %v880
    %v882 = vand.u32 %v881, 4294901760
    %883 = vmatpush2.msra.mxu0 %v882
    %884 = vmatprep.subr.mxu0 0.0
    %v885 = vand.u32 %v159, 4294901760
    %v886 = vsub.f32 %v159, %v885
    %v887 = vand.u32 %v886, 4294901760
    %888 = vmatpush2.msra.mxu0 %v887
    %889 = vmatprep.subr.mxu0 0.0
    %v890 = vand.u32 %v158, 4294901760
    %v891 = vsub.f32 %v158, %v890
    %v892 = vand.u32 %v891, 4294901760
    %893 = vmatpush2.msra.mxu0 %v892
    %894 = vmatprep.subr.mxu0 0.0
    %v895 = vand.u32 %v157, 4294901760
    %v896 = vsub.f32 %v157, %v895
    %v897 = vand.u32 %v896, 4294901760
    %898 = vmatpush2.msra.mxu0 %v897
    %899 = vmatprep.subr.mxu0 0.0
    %v900 = vand.u32 %v156, 4294901760
    %v901 = vsub.f32 %v156, %v900
    %v902 = vand.u32 %v901, 4294901760
    %903 = vmatpush2.msra.mxu0 %v902
    %904 = vmatprep.subr.mxu0 0.0
    %v905 = vand.u32 %v155, 4294901760
    %v906 = vsub.f32 %v155, %v905
    %v907 = vand.u32 %v906, 4294901760
    %908 = vmatpush2.msra.mxu0 %v907
    %909 = vmatprep.subr.mxu0 0.0
    %v910 = vand.u32 %v154, 4294901760
    %v911 = vsub.f32 %v154, %v910
    %v912 = vand.u32 %v911, 4294901760
    %913 = vmatpush2.msra.mxu0 %v912
    %914 = vmatprep.subr.mxu0 0.0
    %v915 = vand.u32 %v153, 4294901760
    %v916 = vsub.f32 %v153, %v915
    %v917 = vand.u32 %v916, 4294901760
    %918 = vmatpush2.msra.mxu0 %v917
    %v919 = vand.u32 %v136, 4294901760
    %920 = vmatprep.mubr.f32.mxu0 %v919
    %v921 = vand.u32 %v135, 4294901760
    %922 = vmatmul.mubr.f32.gmra.mxu0 %v921
    %v923 = vpop.f32.mrf.mxu0
    %v924 = vadd.f32 %v756, %v923
    %v925 = vpop.f32.mrf.mxu0
    %926 = vdwg.mxu0
    %927 = vmatprep.subr.mxu0 0.0
    %v928 = vand.u32 %v152, 4294901760
    %929 = vmatpush1.msra.mxu0 %v928
    %930 = vmatprep.subr.mxu0 0.0
    %v931 = vand.u32 %v151, 4294901760
    %932 = vmatpush1.msra.mxu0 %v931
    %933 = vmatprep.subr.mxu0 0.0
    %v934 = vand.u32 %v150, 4294901760
    %935 = vmatpush1.msra.mxu0 %v934
    %936 = vmatprep.subr.mxu0 0.0
    %v937 = vand.u32 %v149, 4294901760
    %938 = vmatpush1.msra.mxu0 %v937
    %939 = vmatprep.subr.mxu0 0.0
    %v940 = vand.u32 %v148, 4294901760
    %941 = vmatpush1.msra.mxu0 %v940
    %942 = vmatprep.subr.mxu0 0.0
    %v943 = vand.u32 %v147, 4294901760
    %944 = vmatpush1.msra.mxu0 %v943
    %945 = vmatprep.subr.mxu0 0.0
    %v946 = vand.u32 %v146, 4294901760
    %947 = vmatpush1.msra.mxu0 %v946
    %948 = vmatprep.subr.mxu0 0.0
    %v949 = vand.u32 %v145, 4294901760
    %950 = vmatpush1.msra.mxu0 %v949
    %951 = vmatprep.subr.mxu0 0.0
    %v952 = vand.u32 %v144, 4294901760
    %953 = vmatpush1.msra.mxu0 %v952
    %954 = vmatprep.subr.mxu0 0.0
    %v955 = vand.u32 %v143, 4294901760
    %956 = vmatpush1.msra.mxu0 %v955
    %957 = vmatprep.subr.mxu0 0.0
    %v958 = vand.u32 %v142, 4294901760
    %959 = vmatpush1.msra.mxu0 %v958
    %960 = vmatprep.subr.mxu0 0.0
    %v961 = vand.u32 %v141, 4294901760
    %962 = vmatpush1.msra.mxu0 %v961
    %963 = vmatprep.subr.mxu0 0.0
    %v964 = vand.u32 %v140, 4294901760
    %965 = vmatpush1.msra.mxu0 %v964
    %966 = vmatprep.subr.mxu0 0.0
    %v967 = vand.u32 %v139, 4294901760
    %968 = vmatpush1.msra.mxu0 %v967
    %969 = vmatprep.subr.mxu0 0.0
    %v970 = vand.u32 %v138, 4294901760
    %971 = vmatpush1.msra.mxu0 %v970
    %972 = vmatprep.subr.mxu0 0.0
    %v973 = vand.u32 %v137, 4294901760
    %974 = vmatpush1.msra.mxu0 %v973
    %975 = vmatprep.subr.mxu0 0.0
    %v976 = vand.u32 %v168, 4294901760
    %977 = vmatpush2.msra.mxu0 %v976
    %978 = vmatprep.subr.mxu0 0.0
    %v979 = vand.u32 %v167, 4294901760
    %980 = vmatpush2.msra.mxu0 %v979
    %981 = vmatprep.subr.mxu0 0.0
    %v982 = vand.u32 %v166, 4294901760
    %983 = vmatpush2.msra.mxu0 %v982
    %984 = vmatprep.subr.mxu0 0.0
    %v985 = vand.u32 %v165, 4294901760
    %986 = vmatpush2.msra.mxu0 %v985
    %987 = vmatprep.subr.mxu0 0.0
    %v988 = vand.u32 %v164, 4294901760
    %989 = vmatpush2.msra.mxu0 %v988
    %990 = vmatprep.subr.mxu0 0.0
    %v991 = vand.u32 %v163, 4294901760
    %992 = vmatpush2.msra.mxu0 %v991
    %993 = vmatprep.subr.mxu0 0.0
    %v994 = vand.u32 %v162, 4294901760
    %995 = vmatpush2.msra.mxu0 %v994
    %996 = vmatprep.subr.mxu0 0.0
    %v997 = vand.u32 %v161, 4294901760
    %998 = vmatpush2.msra.mxu0 %v997
    %999 = vmatprep.subr.mxu0 0.0
    %v1000 = vand.u32 %v160, 4294901760
    %1001 = vmatpush2.msra.mxu0 %v1000
    %1002 = vmatprep.subr.mxu0 0.0
    %v1003 = vand.u32 %v159, 4294901760
    %1004 = vmatpush2.msra.mxu0 %v1003
    %1005 = vmatprep.subr.mxu0 0.0
    %v1006 = vand.u32 %v158, 4294901760
    %1007 = vmatpush2.msra.mxu0 %v1006
    %1008 = vmatprep.subr.mxu0 0.0
    %v1009 = vand.u32 %v157, 4294901760
    %1010 = vmatpush2.msra.mxu0 %v1009
    %1011 = vmatprep.subr.mxu0 0.0
    %v1012 = vand.u32 %v156, 4294901760
    %1013 = vmatpush2.msra.mxu0 %v1012
    %1014 = vmatprep.subr.mxu0 0.0
    %v1015 = vand.u32 %v155, 4294901760
    %1016 = vmatpush2.msra.mxu0 %v1015
    %1017 = vmatprep.subr.mxu0 0.0
    %v1018 = vand.u32 %v154, 4294901760
    %1019 = vmatpush2.msra.mxu0 %v1018
    %1020 = vmatprep.subr.mxu0 0.0
    %v1021 = vand.u32 %v153, 4294901760
    %1022 = vmatpush2.msra.mxu0 %v1021
    %v1023 = vand.u32 %v136, 4294901760
    %1024 = vmatprep.mubr.f32.mxu0 %v1023
    %v1025 = vand.u32 %v135, 4294901760
    %1026 = vmatmul.mubr.f32.gmra.mxu0 %v1025
    %v1027 = vpop.f32.mrf.mxu0
    %v1028 = vadd.f32 %v924, %v1027
    %v1029 = vpop.f32.mrf.mxu0
    %1030 = vdwg.mxu0
    %1031 = vst [vmem:[#allocation4] sm:$0xff] %v1028
    // Predicated region
    $region44: #{label_embedder_forward.1} parent=1 // pred_check
      _
    $region45: #{label_embedder_forward.1} parent=1 // pred_check_branch
      %1033 = sbr.rel (0) target = $region47
    $region46: #{label_embedder_forward.1} parent=1 // pred_region
      %s1035 = ssub.s32 128, 128
      %1036 = vsyncadd [#allocation5], %s1035
      %s1038 = sshll.u32 [#allocation4], 4
      %s1039 = int_to_ptr.vmem [resolvable:$true] %s1038
      %1041 = dma.vmem_to_hbm [thread:$0]  %s1039, 128, %s2, [#allocation5]
    $region47: #{label_embedder_forward.1} parent=1 // pred_fallthru
      _
    // Predicated region
    $region48: #{label_embedder_forward.1} parent=1 // pred_check
      _
    $region49: #{label_embedder_forward.1} parent=1 // pred_check_branch
      %1043 = sbr.rel (0) target = $region51
    $region50: #{label_embedder_forward.1} parent=1 // pred_region
      %1044 = dma.done [#allocation5], 128
    $region51: #{label_embedder_forward.1} parent=1 // pred_fallthru
      _
    %1045 = vsyncpa [#allocation5], 1
  %1046 = vsyncmov [#allocation3]
  %s1047 = vpop.sfrf %1046
  %p1048 = scmp.eq.s32.totalorder %s1047, 0
  %p1049 = pneg %p1048
  %1051 = shalt.err (%p1049)

</llo_original>
